<compile_context>
chip_gen: v7x
topology: tpu7x:2x2x1
jax: 0.10.0
libtpu: 0.0.40
codegen_flags: <defaults>
</compile_context>

<pallas_src>
import jax
import jax.numpy as jnp
from jax import lax
from jax.experimental import pallas as pl
from jax.experimental.pallas import tpu as pltpu


def node_model_kernel(eps_ref, edge_ref, x_ref, row_ref, col_ref,
                      w1_ref, b1_ref, w2_ref, b2_ref, out_ref):
    """One grid step == Bt graphs of the batch, stacked along the node axis.

    eps_ref  : SMEM (1,)            f32  (scalar prefetch)
    edge_ref : VMEM (1, 2, Bt*E)    i32  (globalized node indices; row0=src, row1=dst)
    x_ref    : VMEM (1, Bt*N, F)    f32
    row_ref  : VMEM (1, Bt*N*N)     i32  (static: node row index of flat output pos r)
    col_ref  : VMEM (1, Bt*N*N)     i32  (static: node col index of flat output pos r)
    w1_ref   : VMEM (F, H) ; b1_ref : (1, H)
    w2_ref   : VMEM (H, O) ; b2_ref : (1, O)
    out_ref  : VMEM (1, 1, Bt*N*N)  f32  (lane-dense flattened Gram matrices)
    """
    edges = edge_ref[0]                       # (2, Bt*E) int32
    x = x_ref[0]                              # (Bt*N, F) f32
    m = x.shape[0]                            # Bt*N  (total nodes this step)
    ne = edges.shape[1]                       # Bt*E  (total edges this step)
    nn_flat = row_ref.shape[1]                # Bt*N*N

    # ---- GIN sum-aggregation for all Bt graphs at once (single iota, two one-hots) ----
    # Global indices keep graphs isolated, so one big selector matmul is exact.
    node_iota = lax.broadcasted_iota(jnp.int32, (m, ne), 0)       # (Bt*N, Bt*E)
    src_oh = (node_iota == edges[0:1, :]).astype(jnp.float32)     # (Bt*N, Bt*E)
    dst_oh = (node_iota == edges[1:2, :]).astype(jnp.float32)
    # messages[e] = x[src[e]]   (contract over node dim)  -> (Bt*E, F)
    messages = lax.dot_general(src_oh, x, (((0,), (0,)), ((), ())),
                               preferred_element_type=jnp.float32)
    # agg[i] = sum_{dst[e]==i} messages[e]                -> (Bt*N, F)
    agg = jnp.dot(dst_oh, messages, preferred_element_type=jnp.float32)

    eps = eps_ref[0]                          # scalar read from SMEM
    h0 = (1.0 + eps) * x + agg                # GIN: (1 + eps) * x_i + sum_{j -> i} x_j

    # ---- 2-layer MLP (Linear -> ReLU -> Linear -> ReLU), fused across all graphs ----
    h1 = jnp.maximum(jnp.dot(h0, w1_ref[...], preferred_element_type=jnp.float32)
                     + b1_ref[...], 0.0)      # (Bt*N, H)
    h2 = jnp.maximum(jnp.dot(h1, w2_ref[...], preferred_element_type=jnp.float32)
                     + b2_ref[...], 0.0)      # (Bt*N, O)

    # ---- per-graph edge_feats = h @ h.T, emitted as a lane-dense (1, Bt*N*N) slab ----
    # out[r] = <h2[row_ids[r]], h2[col_ids[r]]>; row/col id vectors are static (wrapper).
    node_m = lax.broadcasted_iota(jnp.int32, (m, nn_flat), 0)     # (Bt*N, Bt*N*N)
    row_sel = (node_m == row_ref[...]).astype(jnp.float32)
    col_sel = (node_m == col_ref[...]).astype(jnp.float32)
    lhs = lax.dot_general(h2, row_sel, (((0,), (0,)), ((), ())),
                          preferred_element_type=jnp.float32)     # (O, Bt*N*N)
    rhs = lax.dot_general(h2, col_sel, (((0,), (0,)), ((), ())),
                          preferred_element_type=jnp.float32)     # (O, Bt*N*N)
    out_ref[0] = jnp.sum(lhs * rhs, axis=0, keepdims=True)        # (1, Bt*N*N), unmasked vst


def _default_num_steps(batch):
    """1 grid step on single-TensorCore parts (v5e/v6e); 2 on dual-TC v7x (megacore)."""
    if batch < 2 or batch % 2 != 0:
        return 1
    try:
        kind = jax.devices()[0].device_kind.lower()
    except Exception:
        kind = ""
    return 2 if "v7" in kind else 1


def node_model_batched(node_feats, edge_idx, w1, b1, w2, b2, eps, num_steps=None):
    """node_feats: (B, N, F) ; edge_idx: (B, 2, E) int (row0=src, row1=dst) -> (B, N, N)."""
    b, n, f = node_feats.shape
    e = edge_idx.shape[2]
    h = w1.shape[1]
    o = w2.shape[1]

    if num_steps is None:
        num_steps = _default_num_steps(b)
    if b % num_steps != 0:
        num_steps = 1
    bt = b // num_steps          # graphs per grid step
    m = bt * n                   # nodes per step
    ne = bt * e                  # edges per step
    nn_flat = bt * n * n         # flattened (lane-dense) output length per step

    # Stack the Bt graphs of each step along the node axis (pure layout plumbing).
    x = node_feats.astype(jnp.float32).reshape(num_steps, m, f)

    # Globalize edge endpoints within each step: node row of graph j (within step) = j*n + idx.
    offs = ((jnp.arange(b, dtype=jnp.int32) % bt) * n)[:, None, None]
    edges = (edge_idx.astype(jnp.int32) + offs)                                # (B, 2, E)
    edges = edges.reshape(num_steps, bt, 2, e).transpose(0, 2, 1, 3).reshape(num_steps, 2, ne)

    # Static row/col node indices of each flat output position r = j*N*N + i*N + k.
    r = jnp.arange(nn_flat, dtype=jnp.int32)
    row_ids = (r // n).reshape(1, nn_flat)                                     # j*N + i
    col_ids = ((r // (n * n)) * n + r % n).reshape(1, nn_flat)                 # j*N + k

    eps_arr = jnp.asarray(eps, jnp.float32).reshape(1)   # scalar-prefetch arg -> SMEM

    grid_spec = pltpu.PrefetchScalarGridSpec(
        num_scalar_prefetch=1,
        grid=(num_steps,),
        in_specs=[
            pl.BlockSpec((1, 2, ne), lambda g, eps_ref: (g, 0, 0)),     # edges (per step)
            pl.BlockSpec((1, m, f), lambda g, eps_ref: (g, 0, 0)),      # node feats (per step)
            pl.BlockSpec((1, nn_flat), lambda g, eps_ref: (0, 0)),      # row ids (resident)
            pl.BlockSpec((1, nn_flat), lambda g, eps_ref: (0, 0)),      # col ids (resident)
            pl.BlockSpec((f, h), lambda g, eps_ref: (0, 0)),            # w1 (resident)
            pl.BlockSpec((1, h), lambda g, eps_ref: (0, 0)),            # b1
            pl.BlockSpec((h, o), lambda g, eps_ref: (0, 0)),            # w2
            pl.BlockSpec((1, o), lambda g, eps_ref: (0, 0)),            # b2
        ],
        out_specs=pl.BlockSpec((1, 1, nn_flat), lambda g, eps_ref: (g, 0, 0)),
    )

    out = pl.pallas_call(
        node_model_kernel,
        out_shape=jax.ShapeDtypeStruct((num_steps, 1, nn_flat), jnp.float32),
        grid_spec=grid_spec,
        compiler_params=pltpu.CompilerParams(dimension_semantics=("parallel",)),
    )(eps_arr, edges, x, row_ids, col_ids,
      w1.astype(jnp.float32), b1.astype(jnp.float32),
      w2.astype(jnp.float32), b2.astype(jnp.float32))

    return out.reshape(b, n, n)


def node_model(node_feats, edge_idx, w1, b1, w2, b2, eps):
    """Single-graph forward matching NodeModel.forward: (N, F), (2, E) -> (N, N)."""
    out = node_model_batched(node_feats[None], edge_idx[None], w1, b1, w2, b2, eps,
                             num_steps=1)
    return out[0]


def node_model_ref(node_feats, edge_idx, w1, b1, w2, b2, eps):
    # Pure-JAX reference (single graph).  Note the module's gin_nn ends with ReLU.
    src, dst = edge_idx[0], edge_idx[1]
    agg = jnp.zeros_like(node_feats).at[dst].add(node_feats[src])
    h0 = (1.0 + eps) * node_feats + agg
    h1 = jnp.maximum(h0 @ w1 + b1, 0.0)
    h2 = jnp.maximum(h1 @ w2 + b2, 0.0)
    return h2 @ h2.T


if __name__ == "__main__":
    gin_in_size, gin_hidden_size, gin_out_size = 3, 16, 16
    B, N, E = 4, 8, 16  # 4 small graphs: 8 nodes, 16 edges each

    key = jax.random.PRNGKey(0)
    k_x, k_e, k_w1, k_b1, k_w2, k_b2 = jax.random.split(key, 6)

    node_feats = jax.random.normal(k_x, (B, N, gin_in_size), dtype=jnp.float32)
    edge_idx = jax.random.randint(k_e, (B, 2, E), 0, N, dtype=jnp.int32)

    # Synthetic parameters, stored (in, out); PyTorch stores (out, in).
    w1 = jax.random.normal(k_w1, (gin_in_size, gin_hidden_size), dtype=jnp.float32) * 0.1
    b1 = jax.random.normal(k_b1, (1, gin_hidden_size), dtype=jnp.float32) * 0.1
    w2 = jax.random.normal(k_w2, (gin_hidden_size, gin_out_size), dtype=jnp.float32) * 0.1
    b2 = jax.random.normal(k_b2, (1, gin_out_size), dtype=jnp.float32) * 0.1
    eps = 0.0  # train_eps=True -> nn.Parameter initialized to 0

    # Batched call with auto step count (1 step on v5e/v6e, 2 on v7x).
    out_auto = jax.block_until_ready(
        node_model_batched(node_feats, edge_idx, w1, b1, w2, b2, eps))
    assert out_auto.shape == (B, N, N)

    # Explicit 2-step variant to also exercise the multi-step (megacore) grid path.
    out_2 = jax.block_until_ready(
        node_model_batched(node_feats, edge_idx, w1, b1, w2, b2, eps, num_steps=2))
    assert out_2.shape == (B, N, N)

    for g in range(B):
        ref = node_model_ref(node_feats[g], edge_idx[g], w1, b1, w2, b2, eps)
        assert jnp.allclose(out_auto[g], ref, atol=1e-4, rtol=1e-4), f"auto mismatch g={g}"
        assert jnp.allclose(out_2[g], ref, atol=1e-4, rtol=1e-4), f"2-step mismatch g={g}"

    # Single-graph wrapper (module-equivalent signature).
    out_1 = jax.block_until_ready(
        node_model(node_feats[0], edge_idx[0], w1, b1, w2, b2, eps))
    ref_1 = node_model_ref(node_feats[0], edge_idx[0], w1, b1, w2, b2, eps)
    assert out_1.shape == (N, N)
    assert jnp.allclose(out_1, ref_1, atol=1e-4, rtol=1e-4), "single-graph mismatch"

    print("KERNEL_OK")
</pallas_src>

<mosaic_0001>
module attributes {stable_mosaic.version = 11 : i64} {
  func.func @node_model_kernel(%arg0: i32, %arg1: memref<1xf32, #tpu.memory_space<smem>>, %arg2: memref<1x2x64xi32, #tpu.memory_space<vmem>>, %arg3: memref<1x32x3xf32, #tpu.memory_space<vmem>>, %arg4: memref<1x256xi32, #tpu.memory_space<vmem>>, %arg5: memref<1x256xi32, #tpu.memory_space<vmem>>, %arg6: memref<3x16xf32, #tpu.memory_space<vmem>>, %arg7: memref<1x16xf32, #tpu.memory_space<vmem>>, %arg8: memref<16x16xf32, #tpu.memory_space<vmem>>, %arg9: memref<1x16xf32, #tpu.memory_space<vmem>>, %arg10: memref<1x1x256xf32, #tpu.memory_space<vmem>>) attributes {dimension_semantics = [#tpu.dimension_semantics<parallel>], iteration_bounds = array<i64: 1>, scalar_prefetch = 1 : i64, scratch_operands = 0 : i64, tpu.core_type = #tpu.core_type<tc>, window_params = [{transform_indices = @transform_0, window_bounds = array<i64: 1, 2, 64>}, {transform_indices = @transform_1, window_bounds = array<i64: 1, 32, 3>}, {pipeline_mode = #tpu.pipeline_mode<synchronous>, transform_indices = @transform_2, window_bounds = array<i64: 1, 256>}, {pipeline_mode = #tpu.pipeline_mode<synchronous>, transform_indices = @transform_3, window_bounds = array<i64: 1, 256>}, {pipeline_mode = #tpu.pipeline_mode<synchronous>, transform_indices = @transform_4, window_bounds = array<i64: 3, 16>}, {pipeline_mode = #tpu.pipeline_mode<synchronous>, transform_indices = @transform_5, window_bounds = array<i64: 1, 16>}, {pipeline_mode = #tpu.pipeline_mode<synchronous>, transform_indices = @transform_6, window_bounds = array<i64: 16, 16>}, {pipeline_mode = #tpu.pipeline_mode<synchronous>, transform_indices = @transform_7, window_bounds = array<i64: 1, 16>}, {transform_indices = @transform_8, window_bounds = array<i64: 1, 1, 256>}]} {
    %c0 = arith.constant 0 : index
    %c0_0 = arith.constant 0 : index
    %c0_1 = arith.constant 0 : index
    %0 = vector.load %arg2[%c0, %c0_0, %c0_1] : memref<1x2x64xi32, #tpu.memory_space<vmem>>, vector<1x2x64xi32>
    %1 = vector.shape_cast %0 : vector<1x2x64xi32> to vector<2x64xi32>
    %c0_2 = arith.constant 0 : index
    %c0_3 = arith.constant 0 : index
    %c0_4 = arith.constant 0 : index
    %2 = vector.load %arg3[%c0_2, %c0_3, %c0_4] : memref<1x32x3xf32, #tpu.memory_space<vmem>>, vector<1x32x3xf32>
    %3 = vector.shape_cast %2 : vector<1x32x3xf32> to vector<32x3xf32>
    %4 = tpu.iota {dimensions = array<i32: 0>} : vector<32x64xi32>
    %5 = vector.extract_strided_slice %1 {offsets = [0, 0], sizes = [1, 64], strides = [1, 1]} : vector<2x64xi32> to vector<1x64xi32>
    %6 = vector.broadcast %5 : vector<1x64xi32> to vector<32x64xi32>
    %7 = arith.cmpi eq, %4, %6 : vector<32x64xi32>
    %8 = arith.extui %7 : vector<32x64xi1> to vector<32x64xi32>
    %9 = arith.sitofp %8 : vector<32x64xi32> to vector<32x64xf32>
    %10 = vector.extract_strided_slice %1 {offsets = [1, 0], sizes = [1, 64], strides = [1, 1]} : vector<2x64xi32> to vector<1x64xi32>
    %11 = vector.broadcast %10 : vector<1x64xi32> to vector<32x64xi32>
    %12 = arith.cmpi eq, %4, %11 : vector<32x64xi32>
    %13 = arith.extui %12 : vector<32x64xi1> to vector<32x64xi32>
    %14 = arith.sitofp %13 : vector<32x64xi32> to vector<32x64xf32>
    %cst = arith.constant dense<0.000000e+00> : vector<64x3xf32>
    %15 = tpu.matmul %9, %3, %cst {dimension_numbers = #tpu.dot_dimension_numbers<[0], [0], [1], [1], [0, 1, 1, 1], [], []>} : vector<32x64xf32>, vector<32x3xf32>, vector<64x3xf32> -> vector<64x3xf32>
    %cst_5 = arith.constant dense<0.000000e+00> : vector<32x3xf32>
    %16 = tpu.matmul %14, %15, %cst_5 {dimension_numbers = #tpu.dot_dimension_numbers<[1], [0], [0], [1], [0, 0, 1, 1], [], []>} : vector<32x64xf32>, vector<64x3xf32>, vector<32x3xf32> -> vector<32x3xf32>
    %c0_6 = arith.constant 0 : index
    %17 = memref.load %arg1[%c0_6] : memref<1xf32, #tpu.memory_space<smem>>
    %cst_7 = arith.constant 1.000000e+00 : f32
    %18 = arith.addf %cst_7, %17 : f32
    %19 = vector.broadcast %18 : f32 to vector<32x3xf32>
    %20 = arith.mulf %19, %3 : vector<32x3xf32>
    %21 = arith.addf %20, %16 : vector<32x3xf32>
    %c0_8 = arith.constant 0 : index
    %c0_9 = arith.constant 0 : index
    %22 = vector.load %arg6[%c0_8, %c0_9] : memref<3x16xf32, #tpu.memory_space<vmem>>, vector<3x16xf32>
    %cst_10 = arith.constant dense<0.000000e+00> : vector<32x16xf32>
    %23 = tpu.matmul %21, %22, %cst_10 {dimension_numbers = #tpu.dot_dimension_numbers<[1], [0], [0], [1], [0, 0, 1, 1], [], []>} : vector<32x3xf32>, vector<3x16xf32>, vector<32x16xf32> -> vector<32x16xf32>
    %c0_11 = arith.constant 0 : index
    %c0_12 = arith.constant 0 : index
    %24 = vector.load %arg7[%c0_11, %c0_12] : memref<1x16xf32, #tpu.memory_space<vmem>>, vector<1x16xf32>
    %25 = vector.broadcast %24 : vector<1x16xf32> to vector<32x16xf32>
    %26 = arith.addf %23, %25 : vector<32x16xf32>
    %cst_13 = arith.constant 0.000000e+00 : f32
    %27 = vector.broadcast %cst_13 : f32 to vector<32x16xf32>
    %28 = arith.maximumf %26, %27 : vector<32x16xf32>
    %c0_14 = arith.constant 0 : index
    %c0_15 = arith.constant 0 : index
    %29 = vector.load %arg8[%c0_14, %c0_15] : memref<16x16xf32, #tpu.memory_space<vmem>>, vector<16x16xf32>
    %cst_16 = arith.constant dense<0.000000e+00> : vector<32x16xf32>
    %30 = tpu.matmul %28, %29, %cst_16 {dimension_numbers = #tpu.dot_dimension_numbers<[1], [0], [0], [1], [0, 0, 1, 1], [], []>} : vector<32x16xf32>, vector<16x16xf32>, vector<32x16xf32> -> vector<32x16xf32>
    %c0_17 = arith.constant 0 : index
    %c0_18 = arith.constant 0 : index
    %31 = vector.load %arg9[%c0_17, %c0_18] : memref<1x16xf32, #tpu.memory_space<vmem>>, vector<1x16xf32>
    %32 = vector.broadcast %31 : vector<1x16xf32> to vector<32x16xf32>
    %33 = arith.addf %30, %32 : vector<32x16xf32>
    %cst_19 = arith.constant 0.000000e+00 : f32
    %34 = vector.broadcast %cst_19 : f32 to vector<32x16xf32>
    %35 = arith.maximumf %33, %34 : vector<32x16xf32>
    %36 = tpu.iota {dimensions = array<i32: 0>} : vector<32x256xi32>
    %c0_20 = arith.constant 0 : index
    %c0_21 = arith.constant 0 : index
    %37 = vector.load %arg4[%c0_20, %c0_21] : memref<1x256xi32, #tpu.memory_space<vmem>>, vector<1x256xi32>
    %38 = vector.broadcast %37 : vector<1x256xi32> to vector<32x256xi32>
    %39 = arith.cmpi eq, %36, %38 : vector<32x256xi32>
    %40 = arith.extui %39 : vector<32x256xi1> to vector<32x256xi32>
    %41 = arith.sitofp %40 : vector<32x256xi32> to vector<32x256xf32>
    %c0_22 = arith.constant 0 : index
    %c0_23 = arith.constant 0 : index
    %42 = vector.load %arg5[%c0_22, %c0_23] : memref<1x256xi32, #tpu.memory_space<vmem>>, vector<1x256xi32>
    %43 = vector.broadcast %42 : vector<1x256xi32> to vector<32x256xi32>
    %44 = arith.cmpi eq, %36, %43 : vector<32x256xi32>
    %45 = arith.extui %44 : vector<32x256xi1> to vector<32x256xi32>
    %46 = arith.sitofp %45 : vector<32x256xi32> to vector<32x256xf32>
    %cst_24 = arith.constant dense<0.000000e+00> : vector<16x256xf32>
    %47 = tpu.matmul %35, %41, %cst_24 {dimension_numbers = #tpu.dot_dimension_numbers<[0], [0], [1], [1], [0, 1, 1, 1], [], []>} : vector<32x16xf32>, vector<32x256xf32>, vector<16x256xf32> -> vector<16x256xf32>
    %cst_25 = arith.constant dense<0.000000e+00> : vector<16x256xf32>
    %48 = tpu.matmul %35, %46, %cst_25 {dimension_numbers = #tpu.dot_dimension_numbers<[0], [0], [1], [1], [0, 1, 1, 1], [], []>} : vector<32x16xf32>, vector<32x256xf32>, vector<16x256xf32> -> vector<16x256xf32>
    %49 = arith.mulf %47, %48 : vector<16x256xf32>
    %cst_26 = arith.constant dense<0.000000e+00> : vector<256xf32>
    %50 = vector.multi_reduction <add>, %49, %cst_26 [0] : vector<16x256xf32> to vector<256xf32>
    %51 = vector.shape_cast %50 : vector<256xf32> to vector<1x256xf32>
    %c0_27 = arith.constant 0 : index
    %c0_28 = arith.constant 0 : index
    %c0_29 = arith.constant 0 : index
    %52 = vector.load %arg10[%c0_27, %c0_28, %c0_29] : memref<1x1x256xf32, #tpu.memory_space<vmem>>, vector<1x1x256xf32>
    %53 = vector.shape_cast %52 : vector<1x1x256xf32> to vector<1x256xf32>
    %54 = vector.shape_cast %51 : vector<1x256xf32> to vector<1x1x256xf32>
    tpu.vector_store %arg10[%c0_27, %c0_28, %c0_29], %54 {strides = array<i32>} : memref<1x1x256xf32, #tpu.memory_space<vmem>>, vector<1x1x256xf32>,
    return
  }
  func.func @transform_0(%arg0: i32, %arg1: memref<1xf32, #tpu.memory_space<smem>>) -> (i32, i32, i32) {
    %c0_i32 = arith.constant 0 : i32
    %c0_i32_0 = arith.constant 0 : i32
    %c0_i32_1 = arith.constant 0 : i32
    return %arg0, %c0_i32, %c0_i32_0 : i32, i32, i32
  }
  func.func @transform_1(%arg0: i32, %arg1: memref<1xf32, #tpu.memory_space<smem>>) -> (i32, i32, i32) {
    %c0_i32 = arith.constant 0 : i32
    %c0_i32_0 = arith.constant 0 : i32
    %c0_i32_1 = arith.constant 0 : i32
    return %arg0, %c0_i32, %c0_i32_0 : i32, i32, i32
  }
  func.func @transform_2(%arg0: i32, %arg1: memref<1xf32, #tpu.memory_space<smem>>) -> (i32, i32) {
    %c0_i32 = arith.constant 0 : i32
    %c0_i32_0 = arith.constant 0 : i32
    %c0_i32_1 = arith.constant 0 : i32
    return %c0_i32, %c0_i32_0 : i32, i32
  }
  func.func @transform_3(%arg0: i32, %arg1: memref<1xf32, #tpu.memory_space<smem>>) -> (i32, i32) {
    %c0_i32 = arith.constant 0 : i32
    %c0_i32_0 = arith.constant 0 : i32
    %c0_i32_1 = arith.constant 0 : i32
    return %c0_i32, %c0_i32_0 : i32, i32
  }
  func.func @transform_4(%arg0: i32, %arg1: memref<1xf32, #tpu.memory_space<smem>>) -> (i32, i32) {
    %c0_i32 = arith.constant 0 : i32
    %c0_i32_0 = arith.constant 0 : i32
    %c0_i32_1 = arith.constant 0 : i32
    return %c0_i32, %c0_i32_0 : i32, i32
  }
  func.func @transform_5(%arg0: i32, %arg1: memref<1xf32, #tpu.memory_space<smem>>) -> (i32, i32) {
    %c0_i32 = arith.constant 0 : i32
    %c0_i32_0 = arith.constant 0 : i32
    %c0_i32_1 = arith.constant 0 : i32
    return %c0_i32, %c0_i32_0 : i32, i32
  }
  func.func @transform_6(%arg0: i32, %arg1: memref<1xf32, #tpu.memory_space<smem>>) -> (i32, i32) {
    %c0_i32 = arith.constant 0 : i32
    %c0_i32_0 = arith.constant 0 : i32
    %c0_i32_1 = arith.constant 0 : i32
    return %c0_i32, %c0_i32_0 : i32, i32
  }
  func.func @transform_7(%arg0: i32, %arg1: memref<1xf32, #tpu.memory_space<smem>>) -> (i32, i32) {
    %c0_i32 = arith.constant 0 : i32
    %c0_i32_0 = arith.constant 0 : i32
    %c0_i32_1 = arith.constant 0 : i32
    return %c0_i32, %c0_i32_0 : i32, i32
  }
  func.func @transform_8(%arg0: i32, %arg1: memref<1xf32, #tpu.memory_space<smem>>) -> (i32, i32, i32) {
    %c0_i32 = arith.constant 0 : i32
    %c0_i32_0 = arith.constant 0 : i32
    %c0_i32_1 = arith.constant 0 : i32
    return %arg0, %c0_i32, %c0_i32_0 : i32, i32, i32
  }
}

</mosaic_0001>

<llo_original>
// kernel: tpu_custom_call.1
$region0: #{tpu_custom_call.1}
  #allocation0 [shape = 'u32[]', space=smem, size = 0x4, offset = 0x4, fixed_abs, tag = 'smem constant byte address 0x4 - core index']
  #allocation1 [shape = 'u32[144,128]{1,0:T(1,128)}', space=vmem, size = 0x12000, scoped, tag = 'internal scratch']
  #allocation2 [shape = 's32[1]{0}', space=sflag, size = 0x4, scoped, tag = 'scoped memory for tpu_custom_call.1']
  #allocation3 [shape = 'f32[1]{0:T(128)S(6)}', space=smem, size = 0x200, scoped, tag = 'prefetched SMEM operand 0']
  %s0 = inlined_call_operand.<no memory space> [shape: f32[1], index: 0, kind: input, shape index: {}]
  %s1 = inlined_call_operand.vmem [shape: s32[1,2,64], index: 1, kind: input, shape index: {}]
  %s2 = inlined_call_operand.vmem [shape: f32[1,32,3], index: 2, kind: input, shape index: {}]
  %s3 = inlined_call_operand.vmem [shape: s32[1,256], index: 3, kind: input, shape index: {}]
  %s4 = inlined_call_operand.vmem [shape: s32[1,256], index: 4, kind: input, shape index: {}]
  %s5 = inlined_call_operand.vmem [shape: f32[3,16], index: 5, kind: input, shape index: {}]
  %s6 = inlined_call_operand.vmem [shape: f32[1,16], index: 6, kind: input, shape index: {}]
  %s7 = inlined_call_operand.vmem [shape: f32[16,16], index: 7, kind: input, shape index: {}]
  %s8 = inlined_call_operand.vmem [shape: f32[1,16], index: 8, kind: input, shape index: {}]
  %s9 = inlined_call_operand.hbm [shape: f32[1,1,256], index: 9, kind: output, shape index: {}]
  %s10 = sld [smem:[#allocation0]]
  $region42: #{tpu_custom_call.1} parent=0
    _
  %s12 = ssub.s32 1, %s10
  %s13 = scalar_select 0, %s12, %s10
  %14 = sst [smem:[#allocation3]] %s0
  $region1: #{tpu_custom_call.1} parent=0
    #allocation4 [shape = 'u8[1024]{0}', space=vmem, size = 0x400, scoped, tag = 'output window, operand 0, single buffered']
    #allocation5 [shape = 's32[1]{0}', space=sflag, size = 0x4, scoped, tag = 'scoped memory for tpu_custom_call.1']
    %15 = vsyncpa [#allocation5], 0
    // Predicated region
    $region2: #{tpu_custom_call.1} parent=1 // pred_check
      _
    $region3: #{tpu_custom_call.1} parent=1 // pred_check_branch
      %17 = sbr.rel (0) target = $region5
    $region4: #{tpu_custom_call.1} parent=1 // pred_region
      _
    $region5: #{tpu_custom_call.1} parent=1 // pred_fallthru
      _
    // Predicated region
    $region6: #{tpu_custom_call.1} parent=1 // pred_check
      _
    $region7: #{tpu_custom_call.1} parent=1 // pred_check_branch
      %19 = sbr.rel (0) target = $region9
    $region8: #{tpu_custom_call.1} parent=1 // pred_region
      _
    $region9: #{tpu_custom_call.1} parent=1 // pred_fallthru
      _
    // Predicated region
    $region10: #{tpu_custom_call.1} parent=1 // pred_check
      _
    $region11: #{tpu_custom_call.1} parent=1 // pred_check_branch
      %21 = sbr.rel (0) target = $region13
    $region12: #{tpu_custom_call.1} parent=1 // pred_region
      _
    $region13: #{tpu_custom_call.1} parent=1 // pred_fallthru
      _
    // Predicated region
    $region14: #{tpu_custom_call.1} parent=1 // pred_check
      _
    $region15: #{tpu_custom_call.1} parent=1 // pred_check_branch
      %23 = sbr.rel (0) target = $region17
    $region16: #{tpu_custom_call.1} parent=1 // pred_region
      _
    $region17: #{tpu_custom_call.1} parent=1 // pred_fallthru
      _
    // Predicated region
    $region18: #{tpu_custom_call.1} parent=1 // pred_check
      _
    $region19: #{tpu_custom_call.1} parent=1 // pred_check_branch
      %25 = sbr.rel (0) target = $region21
    $region20: #{tpu_custom_call.1} parent=1 // pred_region
      _
    $region21: #{tpu_custom_call.1} parent=1 // pred_fallthru
      _
    // Predicated region
    $region22: #{tpu_custom_call.1} parent=1 // pred_check
      _
    $region23: #{tpu_custom_call.1} parent=1 // pred_check_branch
      %27 = sbr.rel (0) target = $region25
    $region24: #{tpu_custom_call.1} parent=1 // pred_region
      _
    $region25: #{tpu_custom_call.1} parent=1 // pred_fallthru
      _
    // Predicated region
    $region26: #{tpu_custom_call.1} parent=1 // pred_check
      _
    $region27: #{tpu_custom_call.1} parent=1 // pred_check_branch
      %29 = sbr.rel (0) target = $region29
    $region28: #{tpu_custom_call.1} parent=1 // pred_region
      _
    $region29: #{tpu_custom_call.1} parent=1 // pred_fallthru
      _
    // Predicated region
    $region30: #{tpu_custom_call.1} parent=1 // pred_check
      _
    $region31: #{tpu_custom_call.1} parent=1 // pred_check_branch
      %31 = sbr.rel (0) target = $region33
    $region32: #{tpu_custom_call.1} parent=1 // pred_region
      _
    $region33: #{tpu_custom_call.1} parent=1 // pred_fallthru
      _
    %v32 = vld [vmem:[%s1] sm:$0x3]
    %v33 = vld [vmem:[%s2] sm:$0xff]
    %v34 = vld [vmem:[%s2 + $0x8] sm:$0xff]
    %v35 = vld [vmem:[%s2 + $0x10] sm:$0xff]
    %v36 = vld [vmem:[%s2 + $0x18] sm:$0xff]
    %v37 = vlaneseq
    %v38 = vshrl.u32 %v37, 7
    %v39 = vadd.s32 %v38, 8
    %v40 = vadd.s32 %v38, 16
    %v41 = vadd.s32 %v38, 24
    %v42 = vlaneseq
    %v43 = vshrl.u32 %v42, 7
    %v44 = vsub.s32 0, %v43
    %v45 = vrot.slane %v32, %v44
    %vm46 = vcmp.eq.s32.totalorder %v38, %v45
    %vm47 = vcmp.eq.s32.totalorder %v39, %v45
    %vm48 = vcmp.eq.s32.totalorder %v40, %v45
    %vm49 = vcmp.eq.s32.totalorder %v41, %v45
    %v50 = vsel %vm46, 1, 0
    %v51 = vsel %vm47, 1, 0
    %v52 = vsel %vm48, 1, 0
    %v53 = vsel %vm49, 1, 0
    %v54 = vcvt.s32.f32 %v50
    %v55 = vcvt.s32.f32 %v51
    %v56 = vcvt.s32.f32 %v52
    %v57 = vcvt.s32.f32 %v53
    %v58 = vlaneseq
    %v59 = vshrl.u32 %v58, 7
    %v60 = vsub.s32 1, %v59
    %v61 = vrot.slane %v32, %v60
    %vm62 = vcmp.eq.s32.totalorder %v38, %v61
    %vm63 = vcmp.eq.s32.totalorder %v39, %v61
    %vm64 = vcmp.eq.s32.totalorder %v40, %v61
    %vm65 = vcmp.eq.s32.totalorder %v41, %v61
    %v66 = vsel %vm62, 1, 0
    %v67 = vsel %vm63, 1, 0
    %v68 = vsel %vm64, 1, 0
    %v69 = vsel %vm65, 1, 0
    %v70 = vcvt.s32.f32 %v66
    %v71 = vcvt.s32.f32 %v67
    %v72 = vcvt.s32.f32 %v68
    %v73 = vcvt.s32.f32 %v69
    %74 = vxpose.xlu0.b32.start [1/16] %v54, 128
    %75 = vxpose.xlu0.b32.cont [2/16] %v55, 128
    %76 = vxpose.xlu0.b32.cont [3/16] %v56, 128
    %77 = vxpose.xlu0.b32.cont [4/16] %v57, 128
    %78 = vxpose.xlu0.b32.cont [5/16] 0.0, 128
    %79 = vxpose.xlu0.b32.cont [6/16] 0.0, 128
    %80 = vxpose.xlu0.b32.cont [7/16] 0.0, 128
    %81 = vxpose.xlu0.b32.cont [8/16] 0.0, 128
    %82 = vxpose.xlu0.b32.cont [9/16] 0.0, 128
    %83 = vxpose.xlu0.b32.cont [10/16] 0.0, 128
    %84 = vxpose.xlu0.b32.cont [11/16] 0.0, 128
    %85 = vxpose.xlu0.b32.cont [12/16] 0.0, 128
    %86 = vxpose.xlu0.b32.cont [13/16] 0.0, 128
    %87 = vxpose.xlu0.b32.cont [14/16] 0.0, 128
    %88 = vxpose.xlu0.b32.cont [15/16] 0.0, 128
    %89 = vxpose.xlu0.b32.end [16/16] 0.0, 128
    %v90 = vpop.trf.xlu0
    %v91 = vpop.trf.xlu0
    %v92 = vpop.trf.xlu0
    %v93 = vpop.trf.xlu0
    %v94 = vpop.trf.xlu0
    %v95 = vpop.trf.xlu0
    %v96 = vpop.trf.xlu0
    %v97 = vpop.trf.xlu0
    %v98 = vpop.trf.xlu0
    %v99 = vpop.trf.xlu0
    %v100 = vpop.trf.xlu0
    %v101 = vpop.trf.xlu0
    %v102 = vpop.trf.xlu0
    %v103 = vpop.trf.xlu0
    %v104 = vpop.trf.xlu0
    %v105 = vpop.trf.xlu0
    %vm106 = vcmask 261120
    %v108 = vsel %vm106, %v90, 0
    %v111 = vsel %vm106, %v91, 0
    %v114 = vsel %vm106, %v92, 0
    %v117 = vsel %vm106, %v93, 0
    %v120 = vsel %vm106, %v94, 0
    %v123 = vsel %vm106, %v95, 0
    %v126 = vsel %vm106, %v96, 0
    %v129 = vsel %vm106, %v97, 0
    %131 = vmatprep.subr.mxu0 0.0
    %132 = vmatpush1.msra.mxu0 %v33
    %133 = vmatprep.subr.mxu0 0.0
    %134 = vmatpush1.msra.mxu0 %v34
    %135 = vmatprep.subr.mxu0 0.0
    %136 = vmatpush1.msra.mxu0 %v35
    %137 = vmatprep.subr.mxu0 0.0
    %138 = vmatpush1.msra.mxu0 %v36
    %139 = vmatprep.subr.mxu0 0.0
    %140 = vmatpush1.msra.mxu0 0.0
    %141 = vmatprep.subr.mxu0 0.0
    %142 = vmatpush1.msra.mxu0 0.0
    %143 = vmatprep.subr.mxu0 0.0
    %144 = vmatpush1.msra.mxu0 0.0
    %145 = vmatprep.subr.mxu0 0.0
    %146 = vmatpush1.msra.mxu0 0.0
    %147 = vmatprep.subr.mxu0 0.0
    %148 = vmatpush1.msra.mxu0 0.0
    %149 = vmatprep.subr.mxu0 0.0
    %150 = vmatpush1.msra.mxu0 0.0
    %151 = vmatprep.subr.mxu0 0.0
    %152 = vmatpush1.msra.mxu0 0.0
    %153 = vmatprep.subr.mxu0 0.0
    %154 = vmatpush1.msra.mxu0 0.0
    %155 = vmatprep.subr.mxu0 0.0
    %156 = vmatpush1.msra.mxu0 0.0
    %157 = vmatprep.subr.mxu0 0.0
    %158 = vmatpush1.msra.mxu0 0.0
    %159 = vmatprep.subr.mxu0 0.0
    %160 = vmatpush1.msra.mxu0 0.0
    %161 = vmatprep.subr.mxu0 0.0
    %162 = vmatpush1.msra.mxu0 0.0
    %163 = vmatprep.subr.mxu0 0.0
    %164 = vmatpush1.msra.mxu0 0.0
    %165 = vmatprep.subr.mxu0 0.0
    %166 = vmatpush1.msra.mxu0 0.0
    %167 = vmatprep.subr.mxu0 0.0
    %168 = vmatpush1.msra.mxu0 0.0
    %169 = vmatprep.subr.mxu0 0.0
    %170 = vmatpush1.msra.mxu0 0.0
    %171 = vmatprep.subr.mxu0 0.0
    %172 = vmatpush1.msra.mxu0 0.0
    %173 = vmatprep.subr.mxu0 0.0
    %174 = vmatpush1.msra.mxu0 0.0
    %175 = vmatprep.subr.mxu0 0.0
    %176 = vmatpush1.msra.mxu0 0.0
    %177 = vmatprep.subr.mxu0 0.0
    %178 = vmatpush1.msra.mxu0 0.0
    %179 = vmatprep.subr.mxu0 0.0
    %180 = vmatpush1.msra.mxu0 0.0
    %181 = vmatprep.subr.mxu0 0.0
    %182 = vmatpush1.msra.mxu0 0.0
    %183 = vmatprep.subr.mxu0 0.0
    %184 = vmatpush1.msra.mxu0 0.0
    %185 = vmatprep.subr.mxu0 0.0
    %186 = vmatpush1.msra.mxu0 0.0
    %187 = vmatprep.subr.mxu0 0.0
    %188 = vmatpush1.msra.mxu0 0.0
    %189 = vmatprep.subr.mxu0 0.0
    %190 = vmatpush1.msra.mxu0 0.0
    %191 = vmatprep.subr.mxu0 0.0
    %192 = vmatpush1.msra.mxu0 0.0
    %193 = vmatprep.subr.mxu0 0.0
    %194 = vmatpush1.msra.mxu0 0.0
    %195 = vmatprep.mubr.f32.mxu0 0.0
    %196 = vmatmul.mubr.f32.gmra.mrb[0].mxu0 %v108
    %v197 = vpop.f32.mrb[0].mxu0
    %v198 = vadd.f32 0.0, %v197
    %v199 = vpop.f32.mrb[0].mxu0
    %200 = vmatprep.mubr.f32.mxu0 0.0
    %201 = vmatmul.mubr.f32.gmra.mrb[0].mxu0 %v111
    %v202 = vpop.f32.mrb[0].mxu0
    %v203 = vadd.f32 0.0, %v202
    %v204 = vpop.f32.mrb[0].mxu0
    %205 = vmatprep.mubr.f32.mxu0 0.0
    %206 = vmatmul.mubr.f32.gmra.mrb[0].mxu0 %v114
    %v207 = vpop.f32.mrb[0].mxu0
    %v208 = vadd.f32 0.0, %v207
    %v209 = vpop.f32.mrb[0].mxu0
    %210 = vmatprep.mubr.f32.mxu0 0.0
    %211 = vmatmul.mubr.f32.gmra.mrb[0].mxu0 %v117
    %v212 = vpop.f32.mrb[0].mxu0
    %v213 = vadd.f32 0.0, %v212
    %v214 = vpop.f32.mrb[0].mxu0
    %215 = vmatprep.mubr.f32.mxu0 0.0
    %216 = vmatmul.mubr.f32.gmra.mrb[0].mxu0 %v120
    %v217 = vpop.f32.mrb[0].mxu0
    %v218 = vadd.f32 0.0, %v217
    %v219 = vpop.f32.mrb[0].mxu0
    %220 = vmatprep.mubr.f32.mxu0 0.0
    %221 = vmatmul.mubr.f32.gmra.mrb[0].mxu0 %v123
    %v222 = vpop.f32.mrb[0].mxu0
    %v223 = vadd.f32 0.0, %v222
    %v224 = vpop.f32.mrb[0].mxu0
    %225 = vmatprep.mubr.f32.mxu0 0.0
    %226 = vmatmul.mubr.f32.gmra.mrb[0].mxu0 %v126
    %v227 = vpop.f32.mrb[0].mxu0
    %v228 = vadd.f32 0.0, %v227
    %v229 = vpop.f32.mrb[0].mxu0
    %230 = vmatprep.mubr.f32.mxu0 0.0
    %231 = vmatmul.mubr.f32.gmra.mrb[0].mxu0 %v129
    %v232 = vpop.f32.mrb[0].mxu0
    %v233 = vadd.f32 0.0, %v232
    %v234 = vpop.f32.mrb[0].mxu0
    %235 = vdwg.mxu0
    %vm236 = vcmask 523264
    %v238 = vsel %vm236, %v70, 0
    %v241 = vsel %vm236, %v71, 0
    %v244 = vsel %vm236, %v72, 0
    %v247 = vsel %vm236, %v73, 0
    %249 = vmatprep.subr.mxu0 0.0
    %250 = vmatpush1.msra.mxu0 %v198
    %251 = vmatprep.subr.mxu0 0.0
    %252 = vmatpush1.msra.mxu0 %v203
    %253 = vmatprep.subr.mxu0 0.0
    %254 = vmatpush1.msra.mxu0 %v208
    %255 = vmatprep.subr.mxu0 0.0
    %256 = vmatpush1.msra.mxu0 %v213
    %257 = vmatprep.subr.mxu0 0.0
    %258 = vmatpush1.msra.mxu0 %v218
    %259 = vmatprep.subr.mxu0 0.0
    %260 = vmatpush1.msra.mxu0 %v223
    %261 = vmatprep.subr.mxu0 0.0
    %262 = vmatpush1.msra.mxu0 %v228
    %263 = vmatprep.subr.mxu0 0.0
    %264 = vmatpush1.msra.mxu0 %v233
    %265 = vmatprep.subr.mxu0 0.0
    %266 = vmatpush1.msra.mxu0 0.0
    %267 = vmatprep.subr.mxu0 0.0
    %268 = vmatpush1.msra.mxu0 0.0
    %269 = vmatprep.subr.mxu0 0.0
    %270 = vmatpush1.msra.mxu0 0.0
    %271 = vmatprep.subr.mxu0 0.0
    %272 = vmatpush1.msra.mxu0 0.0
    %273 = vmatprep.subr.mxu0 0.0
    %274 = vmatpush1.msra.mxu0 0.0
    %275 = vmatprep.subr.mxu0 0.0
    %276 = vmatpush1.msra.mxu0 0.0
    %277 = vmatprep.subr.mxu0 0.0
    %278 = vmatpush1.msra.mxu0 0.0
    %279 = vmatprep.subr.mxu0 0.0
    %280 = vmatpush1.msra.mxu0 0.0
    %281 = vmatprep.subr.mxu0 0.0
    %282 = vmatpush1.msra.mxu0 0.0
    %283 = vmatprep.subr.mxu0 0.0
    %284 = vmatpush1.msra.mxu0 0.0
    %285 = vmatprep.subr.mxu0 0.0
    %286 = vmatpush1.msra.mxu0 0.0
    %287 = vmatprep.subr.mxu0 0.0
    %288 = vmatpush1.msra.mxu0 0.0
    %289 = vmatprep.subr.mxu0 0.0
    %290 = vmatpush1.msra.mxu0 0.0
    %291 = vmatprep.subr.mxu0 0.0
    %292 = vmatpush1.msra.mxu0 0.0
    %293 = vmatprep.subr.mxu0 0.0
    %294 = vmatpush1.msra.mxu0 0.0
    %295 = vmatprep.subr.mxu0 0.0
    %296 = vmatpush1.msra.mxu0 0.0
    %297 = vmatprep.subr.mxu0 0.0
    %298 = vmatpush1.msra.mxu0 0.0
    %299 = vmatprep.subr.mxu0 0.0
    %300 = vmatpush1.msra.mxu0 0.0
    %301 = vmatprep.subr.mxu0 0.0
    %302 = vmatpush1.msra.mxu0 0.0
    %303 = vmatprep.subr.mxu0 0.0
    %304 = vmatpush1.msra.mxu0 0.0
    %305 = vmatprep.subr.mxu0 0.0
    %306 = vmatpush1.msra.mxu0 0.0
    %307 = vmatprep.subr.mxu0 0.0
    %308 = vmatpush1.msra.mxu0 0.0
    %309 = vmatprep.subr.mxu0 0.0
    %310 = vmatpush1.msra.mxu0 0.0
    %311 = vmatprep.subr.mxu0 0.0
    %312 = vmatpush1.msra.mxu0 0.0
    %313 = vmatprep.mubr.f32.mxu0 0.0
    %314 = vmatmul.mubr.f32.gmra.mrb[0].mxu0 %v238
    %v315 = vpop.f32.mrb[0].mxu0
    %v316 = vadd.f32 0.0, %v315
    %v317 = vpop.f32.mrb[0].mxu0
    %318 = vmatprep.mubr.f32.mxu0 0.0
    %319 = vmatmul.mubr.f32.gmra.mrb[0].mxu0 %v241
    %v320 = vpop.f32.mrb[0].mxu0
    %v321 = vadd.f32 0.0, %v320
    %v322 = vpop.f32.mrb[0].mxu0
    %323 = vmatprep.mubr.f32.mxu0 0.0
    %324 = vmatmul.mubr.f32.gmra.mrb[0].mxu0 %v244
    %v325 = vpop.f32.mrb[0].mxu0
    %v326 = vadd.f32 0.0, %v325
    %v327 = vpop.f32.mrb[0].mxu0
    %328 = vmatprep.mubr.f32.mxu0 0.0
    %329 = vmatmul.mubr.f32.gmra.mrb[0].mxu0 %v247
    %v330 = vpop.f32.mrb[0].mxu0
    %v331 = vadd.f32 0.0, %v330
    %v332 = vpop.f32.mrb[0].mxu0
    %333 = vdwg.mxu0
    %s334 = sld [smem:[#allocation3]]
    %s335 = sadd.f32 %s334, 1.0
    %v336 = vstv %s335
    %v337 = vmul.f32 %v336, %v33
    %v338 = vmul.f32 %v336, %v34
    %v339 = vmul.f32 %v336, %v35
    %v340 = vmul.f32 %v336, %v36
    %v341 = vadd.f32 %v337, %v316
    %v342 = vadd.f32 %v338, %v321
    %v343 = vadd.f32 %v339, %v326
    %v344 = vadd.f32 %v340, %v331
    %v345 = vld [vmem:[%s5] sm:$0x7]
    %v346 = vld [vmem:[%s6] sm:$0x1]
    %v348 = vlaneseq
    %v349 = vshrl.u32 %v348, 7
    %v350 = vsub.s32 0, %v349
    %v351 = vrot.slane %v346, %v350
    %vm353 = vcmask 23552
    %v355 = vsel %vm353, %v341, 0
    %v358 = vsel %vm353, %v342, 0
    %v361 = vsel %vm353, %v343, 0
    %v364 = vsel %vm353, %v344, 0
    %vm366 = vcmask 1042432
    %v368 = vsel %vm366, %v345, 0
    %370 = vmatprep.subr.mxu0 0.0
    %371 = vmatpush1.msra.mxu0 %v368
    %372 = vmatprep.subr.mxu0 0.0
    %373 = vmatpush1.msra.mxu0 0.0
    %374 = vmatprep.subr.mxu0 0.0
    %375 = vmatpush1.msra.mxu0 0.0
    %376 = vmatprep.subr.mxu0 0.0
    %377 = vmatpush1.msra.mxu0 0.0
    %378 = vmatprep.subr.mxu0 0.0
    %379 = vmatpush1.msra.mxu0 0.0
    %380 = vmatprep.subr.mxu0 0.0
    %381 = vmatpush1.msra.mxu0 0.0
    %382 = vmatprep.subr.mxu0 0.0
    %383 = vmatpush1.msra.mxu0 0.0
    %384 = vmatprep.subr.mxu0 0.0
    %385 = vmatpush1.msra.mxu0 0.0
    %386 = vmatprep.subr.mxu0 0.0
    %387 = vmatpush1.msra.mxu0 0.0
    %388 = vmatprep.subr.mxu0 0.0
    %389 = vmatpush1.msra.mxu0 0.0
    %390 = vmatprep.subr.mxu0 0.0
    %391 = vmatpush1.msra.mxu0 0.0
    %392 = vmatprep.subr.mxu0 0.0
    %393 = vmatpush1.msra.mxu0 0.0
    %394 = vmatprep.subr.mxu0 0.0
    %395 = vmatpush1.msra.mxu0 0.0
    %396 = vmatprep.subr.mxu0 0.0
    %397 = vmatpush1.msra.mxu0 0.0
    %398 = vmatprep.subr.mxu0 0.0
    %399 = vmatpush1.msra.mxu0 0.0
    %400 = vmatprep.subr.mxu0 0.0
    %401 = vmatpush1.msra.mxu0 0.0
    %402 = vmatprep.subr.mxu0 0.0
    %403 = vmatpush1.msra.mxu0 0.0
    %404 = vmatprep.subr.mxu0 0.0
    %405 = vmatpush1.msra.mxu0 0.0
    %406 = vmatprep.subr.mxu0 0.0
    %407 = vmatpush1.msra.mxu0 0.0
    %408 = vmatprep.subr.mxu0 0.0
    %409 = vmatpush1.msra.mxu0 0.0
    %410 = vmatprep.subr.mxu0 0.0
    %411 = vmatpush1.msra.mxu0 0.0
    %412 = vmatprep.subr.mxu0 0.0
    %413 = vmatpush1.msra.mxu0 0.0
    %414 = vmatprep.subr.mxu0 0.0
    %415 = vmatpush1.msra.mxu0 0.0
    %416 = vmatprep.subr.mxu0 0.0
    %417 = vmatpush1.msra.mxu0 0.0
    %418 = vmatprep.subr.mxu0 0.0
    %419 = vmatpush1.msra.mxu0 0.0
    %420 = vmatprep.subr.mxu0 0.0
    %421 = vmatpush1.msra.mxu0 0.0
    %422 = vmatprep.subr.mxu0 0.0
    %423 = vmatpush1.msra.mxu0 0.0
    %424 = vmatprep.subr.mxu0 0.0
    %425 = vmatpush1.msra.mxu0 0.0
    %426 = vmatprep.subr.mxu0 0.0
    %427 = vmatpush1.msra.mxu0 0.0
    %428 = vmatprep.subr.mxu0 0.0
    %429 = vmatpush1.msra.mxu0 0.0
    %430 = vmatprep.subr.mxu0 0.0
    %431 = vmatpush1.msra.mxu0 0.0
    %432 = vmatprep.subr.mxu0 0.0
    %433 = vmatpush1.msra.mxu0 0.0
    %434 = vmatprep.mubr.f32.mxu0 0.0
    %435 = vmatmul.mubr.f32.gmra.mrb[0].mxu0 %v355
    %v436 = vpop.f32.mrb[0].mxu0
    %v437 = vadd.f32 %v351, %v436
    %v438 = vpop.f32.mrb[0].mxu0
    %439 = vmatprep.mubr.f32.mxu0 0.0
    %440 = vmatmul.mubr.f32.gmra.mrb[0].mxu0 %v358
    %v441 = vpop.f32.mrb[0].mxu0
    %v442 = vadd.f32 %v351, %v441
    %v443 = vpop.f32.mrb[0].mxu0
    %444 = vmatprep.mubr.f32.mxu0 0.0
    %445 = vmatmul.mubr.f32.gmra.mrb[0].mxu0 %v361
    %v446 = vpop.f32.mrb[0].mxu0
    %v447 = vadd.f32 %v351, %v446
    %v448 = vpop.f32.mrb[0].mxu0
    %449 = vmatprep.mubr.f32.mxu0 0.0
    %450 = vmatmul.mubr.f32.gmra.mrb[0].mxu0 %v364
    %v451 = vpop.f32.mrb[0].mxu0
    %v452 = vadd.f32 %v351, %v451
    %v453 = vpop.f32.mrb[0].mxu0
    %454 = vdwg.mxu0
    %v455 = vmax.f32 %v437, 0.0
    %v456 = vmax.f32 %v442, 0.0
    %v457 = vmax.f32 %v447, 0.0
    %v458 = vmax.f32 %v452, 0.0
    %v459 = vld [vmem:[%s7] sm:$0xff]
    %v460 = vld [vmem:[%s7 + $0x8] sm:$0xff]
    %v461 = vld [vmem:[%s8] sm:$0x1]
    %v463 = vlaneseq
    %v464 = vshrl.u32 %v463, 7
    %v465 = vsub.s32 0, %v464
    %v466 = vrot.slane %v461, %v465
    %vm468 = vcmask 130048
    %v470 = vsel %vm468, %v455, 0
    %v473 = vsel %vm468, %v456, 0
    %v476 = vsel %vm468, %v457, 0
    %v479 = vsel %vm468, %v458, 0
    %481 = vmatprep.subr.mxu0 0.0
    %482 = vmatpush1.msra.mxu0 %v459
    %483 = vmatprep.subr.mxu0 0.0
    %484 = vmatpush1.msra.mxu0 %v460
    %485 = vmatprep.subr.mxu0 0.0
    %486 = vmatpush1.msra.mxu0 0.0
    %487 = vmatprep.subr.mxu0 0.0
    %488 = vmatpush1.msra.mxu0 0.0
    %489 = vmatprep.subr.mxu0 0.0
    %490 = vmatpush1.msra.mxu0 0.0
    %491 = vmatprep.subr.mxu0 0.0
    %492 = vmatpush1.msra.mxu0 0.0
    %493 = vmatprep.subr.mxu0 0.0
    %494 = vmatpush1.msra.mxu0 0.0
    %495 = vmatprep.subr.mxu0 0.0
    %496 = vmatpush1.msra.mxu0 0.0
    %497 = vmatprep.subr.mxu0 0.0
    %498 = vmatpush1.msra.mxu0 0.0
    %499 = vmatprep.subr.mxu0 0.0
    %500 = vmatpush1.msra.mxu0 0.0
    %501 = vmatprep.subr.mxu0 0.0
    %502 = vmatpush1.msra.mxu0 0.0
    %503 = vmatprep.subr.mxu0 0.0
    %504 = vmatpush1.msra.mxu0 0.0
    %505 = vmatprep.subr.mxu0 0.0
    %506 = vmatpush1.msra.mxu0 0.0
    %507 = vmatprep.subr.mxu0 0.0
    %508 = vmatpush1.msra.mxu0 0.0
    %509 = vmatprep.subr.mxu0 0.0
    %510 = vmatpush1.msra.mxu0 0.0
    %511 = vmatprep.subr.mxu0 0.0
    %512 = vmatpush1.msra.mxu0 0.0
    %513 = vmatprep.subr.mxu0 0.0
    %514 = vmatpush1.msra.mxu0 0.0
    %515 = vmatprep.subr.mxu0 0.0
    %516 = vmatpush1.msra.mxu0 0.0
    %517 = vmatprep.subr.mxu0 0.0
    %518 = vmatpush1.msra.mxu0 0.0
    %519 = vmatprep.subr.mxu0 0.0
    %520 = vmatpush1.msra.mxu0 0.0
    %521 = vmatprep.subr.mxu0 0.0
    %522 = vmatpush1.msra.mxu0 0.0
    %523 = vmatprep.subr.mxu0 0.0
    %524 = vmatpush1.msra.mxu0 0.0
    %525 = vmatprep.subr.mxu0 0.0
    %526 = vmatpush1.msra.mxu0 0.0
    %527 = vmatprep.subr.mxu0 0.0
    %528 = vmatpush1.msra.mxu0 0.0
    %529 = vmatprep.subr.mxu0 0.0
    %530 = vmatpush1.msra.mxu0 0.0
    %531 = vmatprep.subr.mxu0 0.0
    %532 = vmatpush1.msra.mxu0 0.0
    %533 = vmatprep.subr.mxu0 0.0
    %534 = vmatpush1.msra.mxu0 0.0
    %535 = vmatprep.subr.mxu0 0.0
    %536 = vmatpush1.msra.mxu0 0.0
    %537 = vmatprep.subr.mxu0 0.0
    %538 = vmatpush1.msra.mxu0 0.0
    %539 = vmatprep.subr.mxu0 0.0
    %540 = vmatpush1.msra.mxu0 0.0
    %541 = vmatprep.subr.mxu0 0.0
    %542 = vmatpush1.msra.mxu0 0.0
    %543 = vmatprep.subr.mxu0 0.0
    %544 = vmatpush1.msra.mxu0 0.0
    %545 = vmatprep.mubr.f32.mxu0 0.0
    %546 = vmatmul.mubr.f32.gmra.mrb[0].mxu0 %v470
    %v547 = vpop.f32.mrb[0].mxu0
    %v548 = vadd.f32 %v466, %v547
    %v549 = vpop.f32.mrb[0].mxu0
    %550 = vmatprep.mubr.f32.mxu0 0.0
    %551 = vmatmul.mubr.f32.gmra.mrb[0].mxu0 %v473
    %v552 = vpop.f32.mrb[0].mxu0
    %v553 = vadd.f32 %v466, %v552
    %v554 = vpop.f32.mrb[0].mxu0
    %555 = vmatprep.mubr.f32.mxu0 0.0
    %556 = vmatmul.mubr.f32.gmra.mrb[0].mxu0 %v476
    %v557 = vpop.f32.mrb[0].mxu0
    %v558 = vadd.f32 %v466, %v557
    %v559 = vpop.f32.mrb[0].mxu0
    %560 = vmatprep.mubr.f32.mxu0 0.0
    %561 = vmatmul.mubr.f32.gmra.mrb[0].mxu0 %v479
    %v562 = vpop.f32.mrb[0].mxu0
    %v563 = vadd.f32 %v466, %v562
    %v564 = vpop.f32.mrb[0].mxu0
    %565 = vdwg.mxu0
    %v566 = vmax.f32 %v548, 0.0
    %v567 = vmax.f32 %v553, 0.0
    %v568 = vmax.f32 %v558, 0.0
    %v569 = vmax.f32 %v563, 0.0
    %v570 = vld [vmem:[%s3] sm:$0x3]
    %v571 = vlaneseq
    %v572 = vshrl.u32 %v571, 7
    %v573 = vsub.s32 0, %v572
    %v574 = vrot.slane %v570, %v573
    %v575 = vlaneseq
    %v576 = vshrl.u32 %v575, 7
    %v577 = vsub.s32 1, %v576
    %v578 = vrot.slane %v570, %v577
    %vm579 = vcmp.eq.s32.totalorder %v38, %v574
    %vm580 = vcmp.eq.s32.totalorder %v38, %v578
    %vm581 = vcmp.eq.s32.totalorder %v39, %v574
    %vm582 = vcmp.eq.s32.totalorder %v39, %v578
    %vm583 = vcmp.eq.s32.totalorder %v40, %v574
    %vm584 = vcmp.eq.s32.totalorder %v40, %v578
    %vm585 = vcmp.eq.s32.totalorder %v41, %v574
    %vm586 = vcmp.eq.s32.totalorder %v41, %v578
    %v587 = vsel %vm579, 1, 0
    %v588 = vsel %vm580, 1, 0
    %v589 = vsel %vm581, 1, 0
    %v590 = vsel %vm582, 1, 0
    %v591 = vsel %vm583, 1, 0
    %v592 = vsel %vm584, 1, 0
    %v593 = vsel %vm585, 1, 0
    %v594 = vsel %vm586, 1, 0
    %v595 = vcvt.s32.f32 %v587
    %v596 = vcvt.s32.f32 %v588
    %v597 = vcvt.s32.f32 %v589
    %v598 = vcvt.s32.f32 %v590
    %v599 = vcvt.s32.f32 %v591
    %v600 = vcvt.s32.f32 %v592
    %v601 = vcvt.s32.f32 %v593
    %v602 = vcvt.s32.f32 %v594
    %v603 = vld [vmem:[%s4] sm:$0x3]
    %v604 = vlaneseq
    %v605 = vshrl.u32 %v604, 7
    %v606 = vsub.s32 0, %v605
    %v607 = vrot.slane %v603, %v606
    %v608 = vlaneseq
    %v609 = vshrl.u32 %v608, 7
    %v610 = vsub.s32 1, %v609
    %v611 = vrot.slane %v603, %v610
    %vm612 = vcmp.eq.s32.totalorder %v38, %v607
    %vm613 = vcmp.eq.s32.totalorder %v38, %v611
    %vm614 = vcmp.eq.s32.totalorder %v39, %v607
    %vm615 = vcmp.eq.s32.totalorder %v39, %v611
    %vm616 = vcmp.eq.s32.totalorder %v40, %v607
    %vm617 = vcmp.eq.s32.totalorder %v40, %v611
    %vm618 = vcmp.eq.s32.totalorder %v41, %v607
    %vm619 = vcmp.eq.s32.totalorder %v41, %v611
    %v620 = vsel %vm612, 1, 0
    %v621 = vsel %vm613, 1, 0
    %v622 = vsel %vm614, 1, 0
    %v623 = vsel %vm615, 1, 0
    %v624 = vsel %vm616, 1, 0
    %v625 = vsel %vm617, 1, 0
    %v626 = vsel %vm618, 1, 0
    %v627 = vsel %vm619, 1, 0
    %v628 = vcvt.s32.f32 %v620
    %v629 = vcvt.s32.f32 %v621
    %v630 = vcvt.s32.f32 %v622
    %v631 = vcvt.s32.f32 %v623
    %v632 = vcvt.s32.f32 %v624
    %v633 = vcvt.s32.f32 %v625
    %v634 = vcvt.s32.f32 %v626
    %v635 = vcvt.s32.f32 %v627
    %636 = vxpose.xlu0.b32.start [1/16] %v566, 128
    %637 = vxpose.xlu0.b32.cont [2/16] %v567, 128
    %638 = vxpose.xlu0.b32.cont [3/16] %v568, 128
    %639 = vxpose.xlu0.b32.cont [4/16] %v569, 128
    %640 = vxpose.xlu0.b32.cont [5/16] 0.0, 128
    %641 = vxpose.xlu0.b32.cont [6/16] 0.0, 128
    %642 = vxpose.xlu0.b32.cont [7/16] 0.0, 128
    %643 = vxpose.xlu0.b32.cont [8/16] 0.0, 128
    %644 = vxpose.xlu0.b32.cont [9/16] 0.0, 128
    %645 = vxpose.xlu0.b32.cont [10/16] 0.0, 128
    %646 = vxpose.xlu0.b32.cont [11/16] 0.0, 128
    %647 = vxpose.xlu0.b32.cont [12/16] 0.0, 128
    %648 = vxpose.xlu0.b32.cont [13/16] 0.0, 128
    %649 = vxpose.xlu0.b32.cont [14/16] 0.0, 128
    %650 = vxpose.xlu0.b32.cont [15/16] 0.0, 128
    %651 = vxpose.xlu0.b32.end [16/16] 0.0, 128
    %v652 = vpop.trf.xlu0
    %v653 = vpop.trf.xlu0
    %v654 = vpop.trf.xlu0
    %v655 = vpop.trf.xlu0
    %v656 = vpop.trf.xlu0
    %v657 = vpop.trf.xlu0
    %v658 = vpop.trf.xlu0
    %v659 = vpop.trf.xlu0
    %v660 = vpop.trf.xlu0
    %v661 = vpop.trf.xlu0
    %v662 = vpop.trf.xlu0
    %v663 = vpop.trf.xlu0
    %v664 = vpop.trf.xlu0
    %v665 = vpop.trf.xlu0
    %v666 = vpop.trf.xlu0
    %v667 = vpop.trf.xlu0
    %v669 = vsel %vm106, %v652, 0
    %v672 = vsel %vm106, %v653, 0
    %674 = vmatprep.subr.mxu0 %v596
    %675 = vmatpush1.msra.mxu0 %v595
    %676 = vmatprep.subr.mxu0 %v598
    %677 = vmatpush1.msra.mxu0 %v597
    %678 = vmatprep.subr.mxu0 %v600
    %679 = vmatpush1.msra.mxu0 %v599
    %680 = vmatprep.subr.mxu0 %v602
    %681 = vmatpush1.msra.mxu0 %v601
    %682 = vmatprep.subr.mxu0 0.0
    %683 = vmatpush1.msra.mxu0 0.0
    %684 = vmatprep.subr.mxu0 0.0
    %685 = vmatpush1.msra.mxu0 0.0
    %686 = vmatprep.subr.mxu0 0.0
    %687 = vmatpush1.msra.mxu0 0.0
    %688 = vmatprep.subr.mxu0 0.0
    %689 = vmatpush1.msra.mxu0 0.0
    %690 = vmatprep.subr.mxu0 0.0
    %691 = vmatpush1.msra.mxu0 0.0
    %692 = vmatprep.subr.mxu0 0.0
    %693 = vmatpush1.msra.mxu0 0.0
    %694 = vmatprep.subr.mxu0 0.0
    %695 = vmatpush1.msra.mxu0 0.0
    %696 = vmatprep.subr.mxu0 0.0
    %697 = vmatpush1.msra.mxu0 0.0
    %698 = vmatprep.subr.mxu0 0.0
    %699 = vmatpush1.msra.mxu0 0.0
    %700 = vmatprep.subr.mxu0 0.0
    %701 = vmatpush1.msra.mxu0 0.0
    %702 = vmatprep.subr.mxu0 0.0
    %703 = vmatpush1.msra.mxu0 0.0
    %704 = vmatprep.subr.mxu0 0.0
    %705 = vmatpush1.msra.mxu0 0.0
    %706 = vmatprep.subr.mxu0 0.0
    %707 = vmatpush1.msra.mxu0 0.0
    %708 = vmatprep.subr.mxu0 0.0
    %709 = vmatpush1.msra.mxu0 0.0
    %710 = vmatprep.subr.mxu0 0.0
    %711 = vmatpush1.msra.mxu0 0.0
    %712 = vmatprep.subr.mxu0 0.0
    %713 = vmatpush1.msra.mxu0 0.0
    %714 = vmatprep.subr.mxu0 0.0
    %715 = vmatpush1.msra.mxu0 0.0
    %716 = vmatprep.subr.mxu0 0.0
    %717 = vmatpush1.msra.mxu0 0.0
    %718 = vmatprep.subr.mxu0 0.0
    %719 = vmatpush1.msra.mxu0 0.0
    %720 = vmatprep.subr.mxu0 0.0
    %721 = vmatpush1.msra.mxu0 0.0
    %722 = vmatprep.subr.mxu0 0.0
    %723 = vmatpush1.msra.mxu0 0.0
    %724 = vmatprep.subr.mxu0 0.0
    %725 = vmatpush1.msra.mxu0 0.0
    %726 = vmatprep.subr.mxu0 0.0
    %727 = vmatpush1.msra.mxu0 0.0
    %728 = vmatprep.subr.mxu0 0.0
    %729 = vmatpush1.msra.mxu0 0.0
    %730 = vmatprep.subr.mxu0 0.0
    %731 = vmatpush1.msra.mxu0 0.0
    %732 = vmatprep.subr.mxu0 0.0
    %733 = vmatpush1.msra.mxu0 0.0
    %734 = vmatprep.subr.mxu0 0.0
    %735 = vmatpush1.msra.mxu0 0.0
    %736 = vmatprep.subr.mxu0 0.0
    %737 = vmatpush1.msra.mxu0 0.0
    %738 = vmatprep.mubr.f32.mxu0 0.0
    %739 = vmatmul.mubr.f32.gmra.mrb[0].mxu0 %v669
    %v740 = vpop.f32.mrb[0].mxu0
    %v741 = vadd.f32 0.0, %v740
    %v742 = vpop.f32.mrb[0].mxu0
    %v743 = vadd.f32 0.0, %v742
    %744 = vmatprep.mubr.f32.mxu0 0.0
    %745 = vmatmul.mubr.f32.gmra.mrb[0].mxu0 %v672
    %v746 = vpop.f32.mrb[0].mxu0
    %v747 = vadd.f32 0.0, %v746
    %v748 = vpop.f32.mrb[0].mxu0
    %v749 = vadd.f32 0.0, %v748
    %750 = vdwg.mxu0
    %751 = vmatprep.subr.mxu0 %v629
    %752 = vmatpush1.msra.mxu0 %v628
    %753 = vmatprep.subr.mxu0 %v631
    %754 = vmatpush1.msra.mxu0 %v630
    %755 = vmatprep.subr.mxu0 %v633
    %756 = vmatpush1.msra.mxu0 %v632
    %757 = vmatprep.subr.mxu0 %v635
    %758 = vmatpush1.msra.mxu0 %v634
    %759 = vmatprep.subr.mxu0 0.0
    %760 = vmatpush1.msra.mxu0 0.0
    %761 = vmatprep.subr.mxu0 0.0
    %762 = vmatpush1.msra.mxu0 0.0
    %763 = vmatprep.subr.mxu0 0.0
    %764 = vmatpush1.msra.mxu0 0.0
    %765 = vmatprep.subr.mxu0 0.0
    %766 = vmatpush1.msra.mxu0 0.0
    %767 = vmatprep.subr.mxu0 0.0
    %768 = vmatpush1.msra.mxu0 0.0
    %769 = vmatprep.subr.mxu0 0.0
    %770 = vmatpush1.msra.mxu0 0.0
    %771 = vmatprep.subr.mxu0 0.0
    %772 = vmatpush1.msra.mxu0 0.0
    %773 = vmatprep.subr.mxu0 0.0
    %774 = vmatpush1.msra.mxu0 0.0
    %775 = vmatprep.subr.mxu0 0.0
    %776 = vmatpush1.msra.mxu0 0.0
    %777 = vmatprep.subr.mxu0 0.0
    %778 = vmatpush1.msra.mxu0 0.0
    %779 = vmatprep.subr.mxu0 0.0
    %780 = vmatpush1.msra.mxu0 0.0
    %781 = vmatprep.subr.mxu0 0.0
    %782 = vmatpush1.msra.mxu0 0.0
    %783 = vmatprep.subr.mxu0 0.0
    %784 = vmatpush1.msra.mxu0 0.0
    %785 = vmatprep.subr.mxu0 0.0
    %786 = vmatpush1.msra.mxu0 0.0
    %787 = vmatprep.subr.mxu0 0.0
    %788 = vmatpush1.msra.mxu0 0.0
    %789 = vmatprep.subr.mxu0 0.0
    %790 = vmatpush1.msra.mxu0 0.0
    %791 = vmatprep.subr.mxu0 0.0
    %792 = vmatpush1.msra.mxu0 0.0
    %793 = vmatprep.subr.mxu0 0.0
    %794 = vmatpush1.msra.mxu0 0.0
    %795 = vmatprep.subr.mxu0 0.0
    %796 = vmatpush1.msra.mxu0 0.0
    %797 = vmatprep.subr.mxu0 0.0
    %798 = vmatpush1.msra.mxu0 0.0
    %799 = vmatprep.subr.mxu0 0.0
    %800 = vmatpush1.msra.mxu0 0.0
    %801 = vmatprep.subr.mxu0 0.0
    %802 = vmatpush1.msra.mxu0 0.0
    %803 = vmatprep.subr.mxu0 0.0
    %804 = vmatpush1.msra.mxu0 0.0
    %805 = vmatprep.subr.mxu0 0.0
    %806 = vmatpush1.msra.mxu0 0.0
    %807 = vmatprep.subr.mxu0 0.0
    %808 = vmatpush1.msra.mxu0 0.0
    %809 = vmatprep.subr.mxu0 0.0
    %810 = vmatpush1.msra.mxu0 0.0
    %811 = vmatprep.subr.mxu0 0.0
    %812 = vmatpush1.msra.mxu0 0.0
    %813 = vmatprep.subr.mxu0 0.0
    %814 = vmatpush1.msra.mxu0 0.0
    %815 = vmatprep.mubr.f32.mxu0 0.0
    %816 = vmatmul.mubr.f32.gmra.mrb[0].mxu0 %v669
    %v817 = vpop.f32.mrb[0].mxu0
    %v818 = vadd.f32 0.0, %v817
    %v819 = vpop.f32.mrb[0].mxu0
    %v820 = vadd.f32 0.0, %v819
    %821 = vmatprep.mubr.f32.mxu0 0.0
    %822 = vmatmul.mubr.f32.gmra.mrb[0].mxu0 %v672
    %v823 = vpop.f32.mrb[0].mxu0
    %v824 = vadd.f32 0.0, %v823
    %v825 = vpop.f32.mrb[0].mxu0
    %v826 = vadd.f32 0.0, %v825
    %827 = vdwg.mxu0
    %v828 = vmul.f32 %v741, %v818
    %v829 = vmul.f32 %v743, %v820
    %v830 = vmul.f32 %v747, %v824
    %v831 = vmul.f32 %v749, %v826
    %v832 = vadd.f32 %v828, %v830
    %v833 = vrot.slane %v832, 4
    %v834 = vadd.f32 %v832, %v833
    %v835 = vrot.slane %v834, 2
    %v836 = vadd.f32 %v834, %v835
    %v837 = vrot.slane %v836, 1
    %v838 = vadd.f32 %v836, %v837
    %v839 = vadd.f32 %v829, %v831
    %v840 = vrot.slane %v839, 4
    %v841 = vadd.f32 %v839, %v840
    %v842 = vrot.slane %v841, 2
    %v843 = vadd.f32 %v841, %v842
    %v844 = vrot.slane %v843, 1
    %v845 = vadd.f32 %v843, %v844
    %v848 = vcombine.low %v838, %v845
    %v850 = vunpack.c.l.s4 1966171168
    %v851 = vunpack.c.0.s8 %v850
    %v852 = vlaneseq
    %v853 = vshrl.u32 %v852, 7
    %v854 = vsub.s32 %v851, %v853
    %v855 = vrot.slane %v848, %v854
    %v857 = vunpack.c.l.s4 1966171168
    %v858 = vunpack.c.0.s8 %v857
    %v859 = vlaneseq
    %v860 = vshrl.u32 %v859, 7
    %v861 = vsub.s32 %v858, %v860
    %v862 = vrot.slane %v855, %v861
    %v864 = vlaneseq
    %vm865 = vcmp.ge.s32.totalorder %v864, 0
    %vm866 = vcmp.lt.s32.totalorder %v864, 256
    %vm867 = vmand %vm865, %vm866
    %868 = vst.msk [vmem:[#allocation4] sm:$0x3] %vm867, %v862
    // Predicated region
    $region34: #{tpu_custom_call.1} parent=1 // pred_check
      _
    $region35: #{tpu_custom_call.1} parent=1 // pred_check_branch
      %870 = sbr.rel (0) target = $region37
    $region36: #{tpu_custom_call.1} parent=1 // pred_region
      %s872 = ssub.s32 32, 32
      %873 = vsyncadd [#allocation5], %s872
      %s875 = sshll.u32 [#allocation4], 4
      %s876 = int_to_ptr.vmem [resolvable:$true] %s875
      %878 = dma.vmem_to_hbm [thread:$0]  %s876, 32, %s9, [#allocation5]
    $region37: #{tpu_custom_call.1} parent=1 // pred_fallthru
      _
    // Predicated region
    $region38: #{tpu_custom_call.1} parent=1 // pred_check
      _
    $region39: #{tpu_custom_call.1} parent=1 // pred_check_branch
      %880 = sbr.rel (0) target = $region41
    $region40: #{tpu_custom_call.1} parent=1 // pred_region
      %881 = dma.done [#allocation5], 32
    $region41: #{tpu_custom_call.1} parent=1 // pred_fallthru
      _
    %882 = vsyncpa [#allocation5], 1

</llo_original>
